<compile_context>
chip_gen: v5e
topology: v5e:2x2
jax: 0.10.0
libtpu: 0.0.40
codegen_flags: <defaults>
</compile_context>

<pallas_src>
import functools

import jax
import jax.numpy as jnp
import numpy as np
from jax import lax
from jax.experimental import pallas as pl
from jax.experimental.pallas import tpu as pltpu


# ------------------------------- fused kernel ------------------------------- #
def _srt_block_kernel(tr_rows, p_main_ref, p_halo_ref, w1_ref, w2_ref, o_ref,
                      g_ref):
    """One (batch, row-band) grid step of the fused SRTConvBlock.

    p_main_ref: (1, TR, Wo, 4*9*cin)  s2d im2col of the input for this band
    p_halo_ref: (1, 1,  Wo, 4*9*cin)  one s2d row above the band (clamped for band 0)
    w1_ref    : (4*9*cin, 4*hdim)     conv1 block-diagonal weight (resident)
    w2_ref    : (16*hdim, odim)       conv2 weight slab (resident)
    o_ref     : (1, TR, Wo, odim)     conv2+ReLU output, NHWC
    g_ref     : (TR+1, Wo, 4*hdim)    bf16 s2d intermediate (slot 0 = halo row)
    """
    b = pl.program_id(1)
    wo = g_ref.shape[1]
    chg = g_ref.shape[2]                      # 4*hdim
    w1 = w1_ref[...]
    w2 = w2_ref[...]

    # ---- stage 1: conv1 + ReLU, written straight into the s2d intermediate ----
    # Halo slot: global s2d row b*TR - 1; for band 0 it is the conv2 zero top pad.
    @pl.when(b == 0)
    def _():
        g_ref[0] = jnp.zeros((wo, chg), jnp.bfloat16)

    @pl.when(b > 0)
    def _():
        acc = jnp.dot(p_halo_ref[0, 0], w1, preferred_element_type=jnp.float32)
        g_ref[0] = jnp.maximum(acc, 0.0).astype(jnp.bfloat16)

    for r in range(tr_rows):                  # deep-K matmul per s2d row
        acc = jnp.dot(p_main_ref[0, r], w1, preferred_element_type=jnp.float32)
        g_ref[r + 1] = jnp.maximum(acc, 0.0).astype(jnp.bfloat16)

    # ---- stage 2: conv2 (3x3 s2 == 2x2 s1 on s2d) + ReLU, one matmul per row ----
    zrow = jnp.zeros((1, chg), jnp.bfloat16)
    for r in range(tr_rows):
        g_prev = g_ref[r]                     # s2d row oy-1
        g_cur = g_ref[r + 1]                  # s2d row oy
        g_prev_l = jnp.concatenate([zrow, g_prev[:wo - 1, :]], axis=0)  # col ox-1
        g_cur_l = jnp.concatenate([zrow, g_cur[:wo - 1, :]], axis=0)
        lhs = jnp.concatenate([g_prev_l, g_prev, g_cur_l, g_cur], axis=1)
        acc = jnp.dot(lhs, w2, preferred_element_type=jnp.float32)     # (Wo, odim)
        o_ref[0, r] = jnp.maximum(acc, 0.0).astype(o_ref.dtype)


# ---------------------------- wrapper-side packing --------------------------- #
def _prep_conv1_input(x_nchw, dtype):
    """(N, cin, H, W) -> (N, Ho, Wo, 4*9*cin): im2col of conv1, space-to-depth.

    Lane layout per s2d pixel: q = dy*2+dx major, then (ky, kx, cin).
    """
    # TODO(synk): for large cin move this 9x im2col in-kernel (shift-and-matmul).
    N, cin, H, W = x_nchw.shape
    Ho, Wo = H // 2, W // 2
    xh = jnp.transpose(x_nchw, (0, 2, 3, 1))
    xp = jnp.pad(xh, ((0, 0), (1, 1), (1, 1), (0, 0)))
    cols = [xp[:, ky:ky + H, kx:kx + W, :] for ky in range(3) for kx in range(3)]
    pat = jnp.stack(cols, axis=3).reshape(N, H, W, 9 * cin)
    pat = pat.reshape(N, Ho, 2, Wo, 2, 9 * cin)
    pat = jnp.transpose(pat, (0, 1, 3, 2, 4, 5)).reshape(N, Ho, Wo, 4 * 9 * cin)
    return pat.astype(dtype)


def _conv1_weight_blockdiag(w1, dtype):
    # OIHW (hdim, cin, 3, 3) -> block-diag (4*9*cin, 4*hdim); diag block q maps the
    # q-th sub-pixel patch to the q-th hdim output block (s2d channel order).
    hdim, cin = w1.shape[0], w1.shape[1]
    slab = jnp.transpose(w1, (2, 3, 1, 0)).reshape(9 * cin, hdim)   # (ky,kx,c)->hdim
    return jnp.kron(jnp.eye(4, dtype=slab.dtype), slab).astype(dtype)


def _conv2_weight_slab(w2, dtype):
    # OIHW (odim, hdim, 3, 3) -> (16*hdim, odim).  Row index (tr, tc, dy, dx, c),
    # weight = w2[:, c, 2*tr+dy-1, 2*tc+dx-1]; zero block when the offset is < 0.
    odim, hdim = w2.shape[0], w2.shape[1]
    wt = jnp.transpose(w2, (2, 3, 1, 0))                            # (ky, kx, h, o)
    zeros = jnp.zeros((hdim, odim), wt.dtype)
    blocks = []
    for tr in range(2):
        for tc in range(2):
            for dy in range(2):
                for dx in range(2):
                    ky, kx = 2 * tr + dy - 1, 2 * tc + dx - 1
                    blocks.append(wt[ky, kx] if (ky >= 0 and kx >= 0) else zeros)
    return jnp.concatenate(blocks, axis=0).astype(dtype)


def _pick_row_band(ho, target=4):
    for t in range(min(target, ho), 0, -1):
        if ho % t == 0:
            return t
    return 1


# -------------------------------- SRTConvBlock ------------------------------- #
def init_srt_conv_block(key, idim, hdim=None, odim=None, dtype=jnp.float32):
    if hdim is None:
        hdim = idim
    if odim is None:
        odim = 2 * hdim
    k1, k2 = jax.random.split(key)
    w1 = jax.random.normal(k1, (hdim, idim, 3, 3), dtype) * 0.1     # OIHW
    w2 = jax.random.normal(k2, (odim, hdim, 3, 3), dtype) * 0.1     # OIHW
    return {"w1": w1, "w2": w2}


@jax.jit
def srt_conv_block_forward(params, x_nchw):
    N, cin, H, W = x_nchw.shape
    w1, w2 = params["w1"], params["w2"]
    hdim, odim = w1.shape[0], w2.shape[0]
    assert H % 2 == 0 and W % 2 == 0
    Ho, Wo = H // 2, W // 2
    cdt = jnp.bfloat16

    p = _prep_conv1_input(x_nchw, cdt)                 # (N, Ho, Wo, 4*9*cin)
    w1b = _conv1_weight_blockdiag(w1, cdt)             # (4*9*cin, 4*hdim)
    w2s = _conv2_weight_slab(w2, cdt)                  # (16*hdim, odim)
    kc = p.shape[-1]
    chg = 4 * hdim

    tr_rows = _pick_row_band(Ho, target=4)             # rows per band (divides Ho)
    n_bands = Ho // tr_rows

    # VMEM budget: double-buffered in/out blocks + resident weights + scratch.
    est = (2 * (tr_rows * Wo * kc * 2 + Wo * kc * 2 + tr_rows * Wo * odim * 4)
           + w1b.size * 2 + w2s.size * 2 + (tr_rows + 1) * Wo * chg * 2)
    vmem_limit = int(min(64 * 1024 * 1024, max(16 * 1024 * 1024, 4 * est)))

    kernel = functools.partial(_srt_block_kernel, tr_rows)
    out_nhwc = pl.pallas_call(
        kernel,
        out_shape=jax.ShapeDtypeStruct((N, Ho, Wo, odim), jnp.float32),
        grid=(N, n_bands),
        in_specs=[
            pl.BlockSpec((1, tr_rows, Wo, kc), lambda n, b: (n, b, 0, 0)),
            # 1-s2d-row halo (minimal); clamped at band 0, where the kernel writes
            # the zero top-pad row instead of using this block.
            pl.BlockSpec((1, 1, Wo, kc),
                         lambda n, b: (n, jnp.maximum(b * tr_rows - 1, 0), 0, 0)),
            pl.BlockSpec((kc, chg), lambda n, b: (0, 0)),          # resident w1
            pl.BlockSpec((16 * hdim, odim), lambda n, b: (0, 0)),  # resident w2
        ],
        out_specs=pl.BlockSpec((1, tr_rows, Wo, odim), lambda n, b: (n, b, 0, 0)),
        scratch_shapes=[pltpu.VMEM((tr_rows + 1, Wo, chg), jnp.bfloat16)],
        compiler_params=pltpu.CompilerParams(
            dimension_semantics=("parallel", "parallel"),
            vmem_limit_bytes=vmem_limit),
    )(p, p, w1b, w2s)

    return jnp.transpose(out_nhwc, (0, 3, 1, 2))       # NCHW, matches the module


# --------------------------------- reference --------------------------------- #
def _reference_forward(params, x_nchw):
    # Mirrors the kernel's quantization points (bf16 operands / bf16 intermediate,
    # f32 accumulation) so the comparison is tight.
    f32 = jnp.float32
    w1 = params["w1"].astype(jnp.bfloat16).astype(f32)
    w2 = params["w2"].astype(jnp.bfloat16).astype(f32)
    xq = x_nchw.astype(jnp.bfloat16).astype(f32)
    dn = lax.conv_dimension_numbers(x_nchw.shape, w1.shape,
                                    ("NCHW", "OIHW", "NCHW"))
    h = lax.conv_general_dilated(xq, w1, (1, 1), [(1, 1), (1, 1)],
                                 dimension_numbers=dn,
                                 precision=lax.Precision.HIGHEST)
    h = jnp.maximum(h, 0.0).astype(jnp.bfloat16).astype(f32)
    y = lax.conv_general_dilated(h, w2, (2, 2), [(1, 1), (1, 1)],
                                 dimension_numbers=dn,
                                 precision=lax.Precision.HIGHEST)
    return jnp.maximum(y, 0.0)


if __name__ == "__main__":
    key = jax.random.PRNGKey(0)
    kx, kw = jax.random.split(key)

    # Small shapes consistent with the module: batch=2, idim=4, spatial=16.
    N, idim, H, W = 2, 4, 16, 16
    x = jax.random.normal(kx, (N, idim, H, W), jnp.float32)
    params = init_srt_conv_block(kw, idim)             # hdim=4, odim=8

    out = jax.block_until_ready(srt_conv_block_forward(params, x))
    assert out.shape == (N, 8, H // 2, W // 2), out.shape

    ref = jax.block_until_ready(_reference_forward(params, x))
    np.testing.assert_allclose(np.asarray(out), np.asarray(ref),
                               rtol=2e-3, atol=2e-3)

    print("KERNEL_OK")
</pallas_src>

<mosaic_0001>
module attributes {stable_mosaic.version = 11 : i64} {
  func.func @_srt_block_kernel(%arg0: i32, %arg1: i32, %arg2: memref<1x4x8x144xbf16, #tpu.memory_space<vmem>>, %arg3: memref<1x1x8x144xbf16, #tpu.memory_space<vmem>>, %arg4: memref<144x16xbf16, #tpu.memory_space<vmem>>, %arg5: memref<64x8xbf16, #tpu.memory_space<vmem>>, %arg6: memref<1x4x8x8xf32, #tpu.memory_space<vmem>>, %arg7: memref<5x8x16xbf16, #tpu.memory_space<vmem>>) attributes {dimension_semantics = [#tpu.dimension_semantics<parallel>, #tpu.dimension_semantics<parallel>], iteration_bounds = array<i64: 2, 2>, scalar_prefetch = 0 : i64, scratch_operands = 1 : i64, tpu.core_type = #tpu.core_type<tc>, window_params = [{transform_indices = @transform_0, window_bounds = array<i64: 1, 4, 8, 144>}, {transform_indices = @transform_1, window_bounds = array<i64: 1, 1, 8, 144>}, {pipeline_mode = #tpu.pipeline_mode<synchronous>, transform_indices = @transform_2, window_bounds = array<i64: 144, 16>}, {pipeline_mode = #tpu.pipeline_mode<synchronous>, transform_indices = @transform_3, window_bounds = array<i64: 64, 8>}, {transform_indices = @transform_4, window_bounds = array<i64: 1, 4, 8, 8>}]} {
    %c0 = arith.constant 0 : index
    %c0_0 = arith.constant 0 : index
    %0 = vector.load %arg4[%c0, %c0_0] : memref<144x16xbf16, #tpu.memory_space<vmem>>, vector<144x16xbf16>
    %c0_1 = arith.constant 0 : index
    %c0_2 = arith.constant 0 : index
    %1 = vector.load %arg5[%c0_1, %c0_2] : memref<64x8xbf16, #tpu.memory_space<vmem>>, vector<64x8xbf16>
    %c0_i32 = arith.constant 0 : i32
    %2 = arith.cmpi eq, %arg1, %c0_i32 : i32
    %3 = arith.extui %2 : i1 to i32
    %c0_i32_3 = arith.constant 0 : i32
    %4 = arith.cmpi ne, %3, %c0_i32_3 : i32
    scf.if %4 {
      %cst_86 = arith.constant 0.000000e+00 : bf16
      %105 = vector.broadcast %cst_86 : bf16 to vector<8x16xbf16>
      %c0_87 = arith.constant 0 : index
      %c0_88 = arith.constant 0 : index
      %c0_89 = arith.constant 0 : index
      %106 = vector.load %arg7[%c0_87, %c0_88, %c0_89] : memref<5x8x16xbf16, #tpu.memory_space<vmem>>, vector<1x8x16xbf16>
      %107 = vector.shape_cast %106 : vector<1x8x16xbf16> to vector<8x16xbf16>
      %108 = vector.shape_cast %105 : vector<8x16xbf16> to vector<1x8x16xbf16>
      tpu.vector_store %arg7[%c0_87, %c0_88, %c0_89], %108 {strides = array<i32>} : memref<5x8x16xbf16, #tpu.memory_space<vmem>>, vector<1x8x16xbf16>,
    } else {
    }
    %c0_i32_4 = arith.constant 0 : i32
    %5 = arith.cmpi sgt, %arg1, %c0_i32_4 : i32
    %6 = arith.extui %5 : i1 to i32
    %c0_i32_5 = arith.constant 0 : i32
    %7 = arith.cmpi ne, %6, %c0_i32_5 : i32
    scf.if %7 {
      %c0_86 = arith.constant 0 : index
      %c0_87 = arith.constant 0 : index
      %c0_88 = arith.constant 0 : index
      %c0_89 = arith.constant 0 : index
      %105 = vector.load %arg3[%c0_86, %c0_87, %c0_88, %c0_89] : memref<1x1x8x144xbf16, #tpu.memory_space<vmem>>, vector<1x1x8x144xbf16>
      %106 = vector.shape_cast %105 : vector<1x1x8x144xbf16> to vector<8x144xbf16>
      %cst_90 = arith.constant dense<0.000000e+00> : vector<8x16xf32>
      %107 = tpu.matmul %106, %0, %cst_90 {dimension_numbers = #tpu.dot_dimension_numbers<[1], [0], [0], [1], [0, 0, 1, 1], [], []>} : vector<8x144xbf16>, vector<144x16xbf16>, vector<8x16xf32> -> vector<8x16xf32>
      %cst_91 = arith.constant 0.000000e+00 : f32
      %108 = vector.broadcast %cst_91 : f32 to vector<8x16xf32>
      %109 = arith.maximumf %107, %108 : vector<8x16xf32>
      %110 = arith.truncf %109 : vector<8x16xf32> to vector<8x16xbf16>
      %c0_92 = arith.constant 0 : index
      %c0_93 = arith.constant 0 : index
      %c0_94 = arith.constant 0 : index
      %111 = vector.load %arg7[%c0_92, %c0_93, %c0_94] : memref<5x8x16xbf16, #tpu.memory_space<vmem>>, vector<1x8x16xbf16>
      %112 = vector.shape_cast %111 : vector<1x8x16xbf16> to vector<8x16xbf16>
      %113 = vector.shape_cast %110 : vector<8x16xbf16> to vector<1x8x16xbf16>
      tpu.vector_store %arg7[%c0_92, %c0_93, %c0_94], %113 {strides = array<i32>} : memref<5x8x16xbf16, #tpu.memory_space<vmem>>, vector<1x8x16xbf16>,
    } else {
    }
    %c0_6 = arith.constant 0 : index
    %c0_7 = arith.constant 0 : index
    %c0_8 = arith.constant 0 : index
    %c0_9 = arith.constant 0 : index
    %8 = vector.load %arg2[%c0_6, %c0_7, %c0_8, %c0_9] : memref<1x4x8x144xbf16, #tpu.memory_space<vmem>>, vector<1x1x8x144xbf16>
    %9 = vector.shape_cast %8 : vector<1x1x8x144xbf16> to vector<8x144xbf16>
    %cst = arith.constant dense<0.000000e+00> : vector<8x16xf32>
    %10 = tpu.matmul %9, %0, %cst {dimension_numbers = #tpu.dot_dimension_numbers<[1], [0], [0], [1], [0, 0, 1, 1], [], []>} : vector<8x144xbf16>, vector<144x16xbf16>, vector<8x16xf32> -> vector<8x16xf32>
    %cst_10 = arith.constant 0.000000e+00 : f32
    %11 = vector.broadcast %cst_10 : f32 to vector<8x16xf32>
    %12 = arith.maximumf %10, %11 : vector<8x16xf32>
    %13 = arith.truncf %12 : vector<8x16xf32> to vector<8x16xbf16>
    %c1 = arith.constant 1 : index
    %c0_11 = arith.constant 0 : index
    %c0_12 = arith.constant 0 : index
    %14 = vector.load %arg7[%c1, %c0_11, %c0_12] : memref<5x8x16xbf16, #tpu.memory_space<vmem>>, vector<1x8x16xbf16>
    %15 = vector.shape_cast %14 : vector<1x8x16xbf16> to vector<8x16xbf16>
    %16 = vector.shape_cast %13 : vector<8x16xbf16> to vector<1x8x16xbf16>
    tpu.vector_store %arg7[%c1, %c0_11, %c0_12], %16 {strides = array<i32>} : memref<5x8x16xbf16, #tpu.memory_space<vmem>>, vector<1x8x16xbf16>,
    %c0_13 = arith.constant 0 : index
    %c1_14 = arith.constant 1 : index
    %c0_15 = arith.constant 0 : index
    %c0_16 = arith.constant 0 : index
    %17 = vector.load %arg2[%c0_13, %c1_14, %c0_15, %c0_16] : memref<1x4x8x144xbf16, #tpu.memory_space<vmem>>, vector<1x1x8x144xbf16>
    %18 = vector.shape_cast %17 : vector<1x1x8x144xbf16> to vector<8x144xbf16>
    %cst_17 = arith.constant dense<0.000000e+00> : vector<8x16xf32>
    %19 = tpu.matmul %18, %0, %cst_17 {dimension_numbers = #tpu.dot_dimension_numbers<[1], [0], [0], [1], [0, 0, 1, 1], [], []>} : vector<8x144xbf16>, vector<144x16xbf16>, vector<8x16xf32> -> vector<8x16xf32>
    %cst_18 = arith.constant 0.000000e+00 : f32
    %20 = vector.broadcast %cst_18 : f32 to vector<8x16xf32>
    %21 = arith.maximumf %19, %20 : vector<8x16xf32>
    %22 = arith.truncf %21 : vector<8x16xf32> to vector<8x16xbf16>
    %c2 = arith.constant 2 : index
    %c0_19 = arith.constant 0 : index
    %c0_20 = arith.constant 0 : index
    %23 = vector.load %arg7[%c2, %c0_19, %c0_20] : memref<5x8x16xbf16, #tpu.memory_space<vmem>>, vector<1x8x16xbf16>
    %24 = vector.shape_cast %23 : vector<1x8x16xbf16> to vector<8x16xbf16>
    %25 = vector.shape_cast %22 : vector<8x16xbf16> to vector<1x8x16xbf16>
    tpu.vector_store %arg7[%c2, %c0_19, %c0_20], %25 {strides = array<i32>} : memref<5x8x16xbf16, #tpu.memory_space<vmem>>, vector<1x8x16xbf16>,
    %c0_21 = arith.constant 0 : index
    %c2_22 = arith.constant 2 : index
    %c0_23 = arith.constant 0 : index
    %c0_24 = arith.constant 0 : index
    %26 = vector.load %arg2[%c0_21, %c2_22, %c0_23, %c0_24] : memref<1x4x8x144xbf16, #tpu.memory_space<vmem>>, vector<1x1x8x144xbf16>
    %27 = vector.shape_cast %26 : vector<1x1x8x144xbf16> to vector<8x144xbf16>
    %cst_25 = arith.constant dense<0.000000e+00> : vector<8x16xf32>
    %28 = tpu.matmul %27, %0, %cst_25 {dimension_numbers = #tpu.dot_dimension_numbers<[1], [0], [0], [1], [0, 0, 1, 1], [], []>} : vector<8x144xbf16>, vector<144x16xbf16>, vector<8x16xf32> -> vector<8x16xf32>
    %cst_26 = arith.constant 0.000000e+00 : f32
    %29 = vector.broadcast %cst_26 : f32 to vector<8x16xf32>
    %30 = arith.maximumf %28, %29 : vector<8x16xf32>
    %31 = arith.truncf %30 : vector<8x16xf32> to vector<8x16xbf16>
    %c3 = arith.constant 3 : index
    %c0_27 = arith.constant 0 : index
    %c0_28 = arith.constant 0 : index
    %32 = vector.load %arg7[%c3, %c0_27, %c0_28] : memref<5x8x16xbf16, #tpu.memory_space<vmem>>, vector<1x8x16xbf16>
    %33 = vector.shape_cast %32 : vector<1x8x16xbf16> to vector<8x16xbf16>
    %34 = vector.shape_cast %31 : vector<8x16xbf16> to vector<1x8x16xbf16>
    tpu.vector_store %arg7[%c3, %c0_27, %c0_28], %34 {strides = array<i32>} : memref<5x8x16xbf16, #tpu.memory_space<vmem>>, vector<1x8x16xbf16>,
    %c0_29 = arith.constant 0 : index
    %c3_30 = arith.constant 3 : index
    %c0_31 = arith.constant 0 : index
    %c0_32 = arith.constant 0 : index
    %35 = vector.load %arg2[%c0_29, %c3_30, %c0_31, %c0_32] : memref<1x4x8x144xbf16, #tpu.memory_space<vmem>>, vector<1x1x8x144xbf16>
    %36 = vector.shape_cast %35 : vector<1x1x8x144xbf16> to vector<8x144xbf16>
    %cst_33 = arith.constant dense<0.000000e+00> : vector<8x16xf32>
    %37 = tpu.matmul %36, %0, %cst_33 {dimension_numbers = #tpu.dot_dimension_numbers<[1], [0], [0], [1], [0, 0, 1, 1], [], []>} : vector<8x144xbf16>, vector<144x16xbf16>, vector<8x16xf32> -> vector<8x16xf32>
    %cst_34 = arith.constant 0.000000e+00 : f32
    %38 = vector.broadcast %cst_34 : f32 to vector<8x16xf32>
    %39 = arith.maximumf %37, %38 : vector<8x16xf32>
    %40 = arith.truncf %39 : vector<8x16xf32> to vector<8x16xbf16>
    %c4 = arith.constant 4 : index
    %c0_35 = arith.constant 0 : index
    %c0_36 = arith.constant 0 : index
    %41 = vector.load %arg7[%c4, %c0_35, %c0_36] : memref<5x8x16xbf16, #tpu.memory_space<vmem>>, vector<1x8x16xbf16>
    %42 = vector.shape_cast %41 : vector<1x8x16xbf16> to vector<8x16xbf16>
    %43 = vector.shape_cast %40 : vector<8x16xbf16> to vector<1x8x16xbf16>
    tpu.vector_store %arg7[%c4, %c0_35, %c0_36], %43 {strides = array<i32>} : memref<5x8x16xbf16, #tpu.memory_space<vmem>>, vector<1x8x16xbf16>,
    %cst_37 = arith.constant 0.000000e+00 : bf16
    %44 = vector.broadcast %cst_37 : bf16 to vector<1x16xbf16>
    %c0_38 = arith.constant 0 : index
    %c0_39 = arith.constant 0 : index
    %c0_40 = arith.constant 0 : index
    %45 = vector.load %arg7[%c0_38, %c0_39, %c0_40] : memref<5x8x16xbf16, #tpu.memory_space<vmem>>, vector<1x8x16xbf16>
    %46 = vector.shape_cast %45 : vector<1x8x16xbf16> to vector<8x16xbf16>
    %c1_41 = arith.constant 1 : index
    %c0_42 = arith.constant 0 : index
    %c0_43 = arith.constant 0 : index
    %47 = vector.load %arg7[%c1_41, %c0_42, %c0_43] : memref<5x8x16xbf16, #tpu.memory_space<vmem>>, vector<1x8x16xbf16>
    %48 = vector.shape_cast %47 : vector<1x8x16xbf16> to vector<8x16xbf16>
    %49 = vector.extract_strided_slice %46 {offsets = [0, 0], sizes = [7, 16], strides = [1, 1]} : vector<8x16xbf16> to vector<7x16xbf16>
    %50 = tpu.concatenate %44, %49 in 0 : vector<1x16xbf16>, vector<7x16xbf16> -> vector<8x16xbf16>
    %51 = vector.extract_strided_slice %48 {offsets = [0, 0], sizes = [7, 16], strides = [1, 1]} : vector<8x16xbf16> to vector<7x16xbf16>
    %52 = tpu.concatenate %44, %51 in 0 : vector<1x16xbf16>, vector<7x16xbf16> -> vector<8x16xbf16>
    %53 = tpu.concatenate %50, %46, %52, %48 in 1 : vector<8x16xbf16>, vector<8x16xbf16>, vector<8x16xbf16>, vector<8x16xbf16> -> vector<8x64xbf16>
    %cst_44 = arith.constant dense<0.000000e+00> : vector<8x8xf32>
    %54 = tpu.matmul %53, %1, %cst_44 {dimension_numbers = #tpu.dot_dimension_numbers<[1], [0], [0], [1], [0, 0, 1, 1], [], []>} : vector<8x64xbf16>, vector<64x8xbf16>, vector<8x8xf32> -> vector<8x8xf32>
    %cst_45 = arith.constant 0.000000e+00 : f32
    %55 = vector.broadcast %cst_45 : f32 to vector<8x8xf32>
    %56 = arith.maximumf %54, %55 : vector<8x8xf32>
    %c0_46 = arith.constant 0 : index
    %c0_47 = arith.constant 0 : index
    %c0_48 = arith.constant 0 : index
    %c0_49 = arith.constant 0 : index
    %57 = vector.load %arg6[%c0_46, %c0_47, %c0_48, %c0_49] : memref<1x4x8x8xf32, #tpu.memory_space<vmem>>, vector<1x1x8x8xf32>
    %58 = vector.shape_cast %57 : vector<1x1x8x8xf32> to vector<8x8xf32>
    %59 = vector.shape_cast %56 : vector<8x8xf32> to vector<1x1x8x8xf32>
    tpu.vector_store %arg6[%c0_46, %c0_47, %c0_48, %c0_49], %59 {strides = array<i32>} : memref<1x4x8x8xf32, #tpu.memory_space<vmem>>, vector<1x1x8x8xf32>,
    %c1_50 = arith.constant 1 : index
    %c0_51 = arith.constant 0 : index
    %c0_52 = arith.constant 0 : index
    %60 = vector.load %arg7[%c1_50, %c0_51, %c0_52] : memref<5x8x16xbf16, #tpu.memory_space<vmem>>, vector<1x8x16xbf16>
    %61 = vector.shape_cast %60 : vector<1x8x16xbf16> to vector<8x16xbf16>
    %c2_53 = arith.constant 2 : index
    %c0_54 = arith.constant 0 : index
    %c0_55 = arith.constant 0 : index
    %62 = vector.load %arg7[%c2_53, %c0_54, %c0_55] : memref<5x8x16xbf16, #tpu.memory_space<vmem>>, vector<1x8x16xbf16>
    %63 = vector.shape_cast %62 : vector<1x8x16xbf16> to vector<8x16xbf16>
    %64 = vector.extract_strided_slice %61 {offsets = [0, 0], sizes = [7, 16], strides = [1, 1]} : vector<8x16xbf16> to vector<7x16xbf16>
    %65 = tpu.concatenate %44, %64 in 0 : vector<1x16xbf16>, vector<7x16xbf16> -> vector<8x16xbf16>
    %66 = vector.extract_strided_slice %63 {offsets = [0, 0], sizes = [7, 16], strides = [1, 1]} : vector<8x16xbf16> to vector<7x16xbf16>
    %67 = tpu.concatenate %44, %66 in 0 : vector<1x16xbf16>, vector<7x16xbf16> -> vector<8x16xbf16>
    %68 = tpu.concatenate %65, %61, %67, %63 in 1 : vector<8x16xbf16>, vector<8x16xbf16>, vector<8x16xbf16>, vector<8x16xbf16> -> vector<8x64xbf16>
    %cst_56 = arith.constant dense<0.000000e+00> : vector<8x8xf32>
    %69 = tpu.matmul %68, %1, %cst_56 {dimension_numbers = #tpu.dot_dimension_numbers<[1], [0], [0], [1], [0, 0, 1, 1], [], []>} : vector<8x64xbf16>, vector<64x8xbf16>, vector<8x8xf32> -> vector<8x8xf32>
    %cst_57 = arith.constant 0.000000e+00 : f32
    %70 = vector.broadcast %cst_57 : f32 to vector<8x8xf32>
    %71 = arith.maximumf %69, %70 : vector<8x8xf32>
    %c0_58 = arith.constant 0 : index
    %c1_59 = arith.constant 1 : index
    %c0_60 = arith.constant 0 : index
    %c0_61 = arith.constant 0 : index
    %72 = vector.load %arg6[%c0_58, %c1_59, %c0_60, %c0_61] : memref<1x4x8x8xf32, #tpu.memory_space<vmem>>, vector<1x1x8x8xf32>
    %73 = vector.shape_cast %72 : vector<1x1x8x8xf32> to vector<8x8xf32>
    %74 = vector.shape_cast %71 : vector<8x8xf32> to vector<1x1x8x8xf32>
    tpu.vector_store %arg6[%c0_58, %c1_59, %c0_60, %c0_61], %74 {strides = array<i32>} : memref<1x4x8x8xf32, #tpu.memory_space<vmem>>, vector<1x1x8x8xf32>,
    %c2_62 = arith.constant 2 : index
    %c0_63 = arith.constant 0 : index
    %c0_64 = arith.constant 0 : index
    %75 = vector.load %arg7[%c2_62, %c0_63, %c0_64] : memref<5x8x16xbf16, #tpu.memory_space<vmem>>, vector<1x8x16xbf16>
    %76 = vector.shape_cast %75 : vector<1x8x16xbf16> to vector<8x16xbf16>
    %c3_65 = arith.constant 3 : index
    %c0_66 = arith.constant 0 : index
    %c0_67 = arith.constant 0 : index
    %77 = vector.load %arg7[%c3_65, %c0_66, %c0_67] : memref<5x8x16xbf16, #tpu.memory_space<vmem>>, vector<1x8x16xbf16>
    %78 = vector.shape_cast %77 : vector<1x8x16xbf16> to vector<8x16xbf16>
    %79 = vector.extract_strided_slice %76 {offsets = [0, 0], sizes = [7, 16], strides = [1, 1]} : vector<8x16xbf16> to vector<7x16xbf16>
    %80 = tpu.concatenate %44, %79 in 0 : vector<1x16xbf16>, vector<7x16xbf16> -> vector<8x16xbf16>
    %81 = vector.extract_strided_slice %78 {offsets = [0, 0], sizes = [7, 16], strides = [1, 1]} : vector<8x16xbf16> to vector<7x16xbf16>
    %82 = tpu.concatenate %44, %81 in 0 : vector<1x16xbf16>, vector<7x16xbf16> -> vector<8x16xbf16>
    %83 = tpu.concatenate %80, %76, %82, %78 in 1 : vector<8x16xbf16>, vector<8x16xbf16>, vector<8x16xbf16>, vector<8x16xbf16> -> vector<8x64xbf16>
    %cst_68 = arith.constant dense<0.000000e+00> : vector<8x8xf32>
    %84 = tpu.matmul %83, %1, %cst_68 {dimension_numbers = #tpu.dot_dimension_numbers<[1], [0], [0], [1], [0, 0, 1, 1], [], []>} : vector<8x64xbf16>, vector<64x8xbf16>, vector<8x8xf32> -> vector<8x8xf32>
    %cst_69 = arith.constant 0.000000e+00 : f32
    %85 = vector.broadcast %cst_69 : f32 to vector<8x8xf32>
    %86 = arith.maximumf %84, %85 : vector<8x8xf32>
    %c0_70 = arith.constant 0 : index
    %c2_71 = arith.constant 2 : index
    %c0_72 = arith.constant 0 : index
    %c0_73 = arith.constant 0 : index
    %87 = vector.load %arg6[%c0_70, %c2_71, %c0_72, %c0_73] : memref<1x4x8x8xf32, #tpu.memory_space<vmem>>, vector<1x1x8x8xf32>
    %88 = vector.shape_cast %87 : vector<1x1x8x8xf32> to vector<8x8xf32>
    %89 = vector.shape_cast %86 : vector<8x8xf32> to vector<1x1x8x8xf32>
    tpu.vector_store %arg6[%c0_70, %c2_71, %c0_72, %c0_73], %89 {strides = array<i32>} : memref<1x4x8x8xf32, #tpu.memory_space<vmem>>, vector<1x1x8x8xf32>,
    %c3_74 = arith.constant 3 : index
    %c0_75 = arith.constant 0 : index
    %c0_76 = arith.constant 0 : index
    %90 = vector.load %arg7[%c3_74, %c0_75, %c0_76] : memref<5x8x16xbf16, #tpu.memory_space<vmem>>, vector<1x8x16xbf16>
    %91 = vector.shape_cast %90 : vector<1x8x16xbf16> to vector<8x16xbf16>
    %c4_77 = arith.constant 4 : index
    %c0_78 = arith.constant 0 : index
    %c0_79 = arith.constant 0 : index
    %92 = vector.load %arg7[%c4_77, %c0_78, %c0_79] : memref<5x8x16xbf16, #tpu.memory_space<vmem>>, vector<1x8x16xbf16>
    %93 = vector.shape_cast %92 : vector<1x8x16xbf16> to vector<8x16xbf16>
    %94 = vector.extract_strided_slice %91 {offsets = [0, 0], sizes = [7, 16], strides = [1, 1]} : vector<8x16xbf16> to vector<7x16xbf16>
    %95 = tpu.concatenate %44, %94 in 0 : vector<1x16xbf16>, vector<7x16xbf16> -> vector<8x16xbf16>
    %96 = vector.extract_strided_slice %93 {offsets = [0, 0], sizes = [7, 16], strides = [1, 1]} : vector<8x16xbf16> to vector<7x16xbf16>
    %97 = tpu.concatenate %44, %96 in 0 : vector<1x16xbf16>, vector<7x16xbf16> -> vector<8x16xbf16>
    %98 = tpu.concatenate %95, %91, %97, %93 in 1 : vector<8x16xbf16>, vector<8x16xbf16>, vector<8x16xbf16>, vector<8x16xbf16> -> vector<8x64xbf16>
    %cst_80 = arith.constant dense<0.000000e+00> : vector<8x8xf32>
    %99 = tpu.matmul %98, %1, %cst_80 {dimension_numbers = #tpu.dot_dimension_numbers<[1], [0], [0], [1], [0, 0, 1, 1], [], []>} : vector<8x64xbf16>, vector<64x8xbf16>, vector<8x8xf32> -> vector<8x8xf32>
    %cst_81 = arith.constant 0.000000e+00 : f32
    %100 = vector.broadcast %cst_81 : f32 to vector<8x8xf32>
    %101 = arith.maximumf %99, %100 : vector<8x8xf32>
    %c0_82 = arith.constant 0 : index
    %c3_83 = arith.constant 3 : index
    %c0_84 = arith.constant 0 : index
    %c0_85 = arith.constant 0 : index
    %102 = vector.load %arg6[%c0_82, %c3_83, %c0_84, %c0_85] : memref<1x4x8x8xf32, #tpu.memory_space<vmem>>, vector<1x1x8x8xf32>
    %103 = vector.shape_cast %102 : vector<1x1x8x8xf32> to vector<8x8xf32>
    %104 = vector.shape_cast %101 : vector<8x8xf32> to vector<1x1x8x8xf32>
    tpu.vector_store %arg6[%c0_82, %c3_83, %c0_84, %c0_85], %104 {strides = array<i32>} : memref<1x4x8x8xf32, #tpu.memory_space<vmem>>, vector<1x1x8x8xf32>,
    return
  }
  func.func @transform_0(%arg0: i32, %arg1: i32) -> (i32, i32, i32, i32) {
    %c0_i32 = arith.constant 0 : i32
    %c0_i32_0 = arith.constant 0 : i32
    %c0_i32_1 = arith.constant 0 : i32
    return %arg0, %arg1, %c0_i32, %c0_i32_0 : i32, i32, i32, i32
  }
  func.func @transform_1(%arg0: i32, %arg1: i32) -> (i32, i32, i32, i32) {
    %c4_i32 = arith.constant 4 : i32
    %0 = arith.muli %arg1, %c4_i32 : i32
    %c1_i32 = arith.constant 1 : i32
    %1 = arith.subi %0, %c1_i32 : i32
    %c0_i32 = arith.constant 0 : i32
    %2 = arith.maxsi %1, %c0_i32 : i32
    %c0_i32_0 = arith.constant 0 : i32
    %c0_i32_1 = arith.constant 0 : i32
    %c0_i32_2 = arith.constant 0 : i32
    return %arg0, %2, %c0_i32_0, %c0_i32_1 : i32, i32, i32, i32
  }
  func.func @transform_2(%arg0: i32, %arg1: i32) -> (i32, i32) {
    %c0_i32 = arith.constant 0 : i32
    %c0_i32_0 = arith.constant 0 : i32
    %c0_i32_1 = arith.constant 0 : i32
    return %c0_i32, %c0_i32_0 : i32, i32
  }
  func.func @transform_3(%arg0: i32, %arg1: i32) -> (i32, i32) {
    %c0_i32 = arith.constant 0 : i32
    %c0_i32_0 = arith.constant 0 : i32
    %c0_i32_1 = arith.constant 0 : i32
    return %c0_i32, %c0_i32_0 : i32, i32
  }
  func.func @transform_4(%arg0: i32, %arg1: i32) -> (i32, i32, i32, i32) {
    %c0_i32 = arith.constant 0 : i32
    %c0_i32_0 = arith.constant 0 : i32
    %c0_i32_1 = arith.constant 0 : i32
    return %arg0, %arg1, %c0_i32, %c0_i32_0 : i32, i32, i32, i32
  }
}

</mosaic_0001>

<llo_original>
// kernel: mul.4
$region0: #{mul.4}
  %s0 = inlined_call_operand.vmem [shape: f32[3,3,4,4], index: 0, kind: input, shape index: {}]
  %s1 = inlined_call_operand.vmem [shape: f32[36,4], index: 1, kind: output, shape index: {}]
  $region1: #{mul.4} parent=0
    #allocation0 [shape = 'u8[4096]{0}', space=vmem, size = 0x1000, scoped, tag = 'scoped mem for output reshape']
    #allocation1 [shape = 'u8[49152]{0}', space=vmem, size = 0xc000, scoped, tag = 'scoped mem for input reshape']
    %s3 = ssub.s32 16, 1
    %s4 = scalar_lea.vmem %s0, 44
    %v5 = vld [vmem:[%s4] sm:%s3]
    %s6 = scalar_lea.vmem [#allocation1], 88
    %7 = vst [vmem:[%s6] sm:%s3] %v5
    %s8 = scalar_lea.vmem %s0, 40
    %v9 = vld [vmem:[%s8] sm:%s3]
    %s10 = scalar_lea.vmem [#allocation1], 80
    %11 = vst [vmem:[%s10] sm:%s3] %v9
    %s12 = scalar_lea.vmem %s0, 36
    %v13 = vld [vmem:[%s12] sm:%s3]
    %s14 = scalar_lea.vmem [#allocation1], 72
    %15 = vst [vmem:[%s14] sm:%s3] %v13
    %s16 = scalar_lea.vmem %s0, 32
    %v17 = vld [vmem:[%s16] sm:%s3]
    %s18 = scalar_lea.vmem [#allocation1], 64
    %19 = vst [vmem:[%s18] sm:%s3] %v17
    %s20 = scalar_lea.vmem %s0, 28
    %v21 = vld [vmem:[%s20] sm:%s3]
    %s22 = scalar_lea.vmem [#allocation1], 56
    %23 = vst [vmem:[%s22] sm:%s3] %v21
    %s24 = scalar_lea.vmem %s0, 24
    %v25 = vld [vmem:[%s24] sm:%s3]
    %s26 = scalar_lea.vmem [#allocation1], 48
    %27 = vst [vmem:[%s26] sm:%s3] %v25
    %s28 = scalar_lea.vmem %s0, 20
    %v29 = vld [vmem:[%s28] sm:%s3]
    %s30 = scalar_lea.vmem [#allocation1], 40
    %31 = vst [vmem:[%s30] sm:%s3] %v29
    %s32 = scalar_lea.vmem %s0, 16
    %v33 = vld [vmem:[%s32] sm:%s3]
    %s34 = scalar_lea.vmem [#allocation1], 32
    %35 = vst [vmem:[%s34] sm:%s3] %v33
    %s36 = scalar_lea.vmem %s0, 12
    %v37 = vld [vmem:[%s36] sm:%s3]
    %s38 = scalar_lea.vmem [#allocation1], 24
    %39 = vst [vmem:[%s38] sm:%s3] %v37
    %s40 = scalar_lea.vmem %s0, 8
    %v41 = vld [vmem:[%s40] sm:%s3]
    %s42 = scalar_lea.vmem [#allocation1], 16
    %43 = vst [vmem:[%s42] sm:%s3] %v41
    %s44 = scalar_lea.vmem %s0, 4
    %v45 = vld [vmem:[%s44] sm:%s3]
    %s46 = scalar_lea.vmem [#allocation1], 8
    %47 = vst [vmem:[%s46] sm:%s3] %v45
    %v48 = vld [vmem:[%s0] sm:%s3]
    %49 = vst [vmem:[#allocation1] sm:%s3] %v48
    %v50 = vld [vmem:[#allocation1] ss:$24 sm:$0xf]
    %vm51 = vcmask 31744
    %52 = vst.msk [vmem:[#allocation0] sm:$0xf] %vm51, %v50
    %s53 = scalar_lea.vmem [#allocation1], 18
    %v54 = vld [vmem:[%s53] ss:$24 sm:$0xf]
    %55 = vrot.lane.b32.xlu0 %v54, 32
    %v56 = vpop.permute.xlu0 %55
    %vm57 = vcmask 294144
    %58 = vst.msk [vmem:[#allocation0] sm:$0xf] %vm57, %v56
    %s59 = scalar_lea.vmem [#allocation1], 17
    %v60 = vld [vmem:[%s59] ss:$24 sm:$0xf]
    %61 = vrot.lane.b32.xlu0 %v60, 28
    %v62 = vpop.permute.xlu0 %61
    %vm63 = vcmask 261344
    %64 = vst.msk [vmem:[#allocation0] sm:$0xf] %vm63, %v62
    %s65 = scalar_lea.vmem [#allocation1], 16
    %v66 = vld [vmem:[%s65] ss:$24 sm:$0xf]
    %67 = vrot.lane.b32.xlu0 %v66, 24
    %v68 = vpop.permute.xlu0 %67
    %vm69 = vcmask 228544
    %70 = vst.msk [vmem:[#allocation0] sm:$0xf] %vm69, %v68
    %s71 = scalar_lea.vmem [#allocation1], 10
    %v72 = vld [vmem:[%s71] ss:$24 sm:$0xf]
    %73 = vrot.lane.b32.xlu0 %v72, 20
    %v74 = vpop.permute.xlu0 %73
    %vm75 = vcmask 195744
    %76 = vst.msk [vmem:[#allocation0] sm:$0xf] %vm75, %v74
    %s77 = scalar_lea.vmem [#allocation1], 9
    %v78 = vld [vmem:[%s77] ss:$24 sm:$0xf]
    %79 = vrot.lane.b32.xlu0 %v78, 16
    %v80 = vpop.permute.xlu0 %79
    %vm81 = vcmask 162944
    %82 = vst.msk [vmem:[#allocation0] sm:$0xf] %vm81, %v80
    %s83 = scalar_lea.vmem [#allocation1], 8
    %v84 = vld [vmem:[%s83] ss:$24 sm:$0xf]
    %85 = vrot.lane.b32.xlu0 %v84, 12
    %v86 = vpop.permute.xlu0 %85
    %vm87 = vcmask 130144
    %88 = vst.msk [vmem:[#allocation0] sm:$0xf] %vm87, %v86
    %s89 = scalar_lea.vmem [#allocation1], 2
    %v90 = vld [vmem:[%s89] ss:$24 sm:$0xf]
    %91 = vrot.lane.b32.xlu0 %v90, 8
    %v92 = vpop.permute.xlu0 %91
    %vm93 = vcmask 97344
    %94 = vst.msk [vmem:[#allocation0] sm:$0xf] %vm93, %v92
    %s95 = scalar_lea.vmem [#allocation1], 1
    %v96 = vld [vmem:[%s95] ss:$24 sm:$0xf]
    %97 = vrot.lane.b32.xlu0 %v96, 4
    %v98 = vpop.permute.xlu0 %97
    %vm99 = vcmask 64544
    %100 = vst.msk [vmem:[#allocation0] sm:$0xf] %vm99, %v98
    %s102 = ssub.s32 16, 1
    %v103 = vld [vmem:[#allocation0] sm:%s102]
    %s105 = ssub.s32 16, 1
    %106 = vst [vmem:[%s1] sm:%s105] %v103

// kernel: srt_conv_block_forward.1
$region0: #{srt_conv_block_forward.1}
  #allocation0 [shape = 'u32[]', space=smem, size = 0x4, offset = 0x4, fixed_abs, tag = 'smem constant byte address 0x4 - core index']
  #allocation1 [shape = 'u32[72,128]{1,0:T(1,128)}', space=vmem, size = 0x9000, scoped, tag = 'internal scratch']
  #allocation2 [shape = 'bf16[5,8,16]{2,1,0:T(8,128)(2,1)}', space=vmem, size = 0x2800, scoped, tag = 'scratch operand']
  %s0 = inlined_call_operand.vmem [shape: bf16[2,8,8,144], index: 0, kind: input, shape index: {}, may-alias: {0,1}]
  %s1 = inlined_call_operand.vmem [shape: bf16[2,8,8,144], index: 1, kind: input, shape index: {}, may-alias: {0,1}]
  %s2 = inlined_call_operand.vmem [shape: bf16[144,16], index: 2, kind: input, shape index: {}]
  %s3 = inlined_call_operand.vmem [shape: bf16[64,8], index: 3, kind: input, shape index: {}]
  %s4 = inlined_call_operand.vmem [shape: f32[2,8,8,8], index: 4, kind: output, shape index: {}]
  %s5 = sld [smem:[#allocation0]]
  $region57: #{srt_conv_block_forward.1} parent=0
    _
  %s7 = ssub.s32 1, %s5
  %s8 = scalar_select 0, %s7, %s5
  loop: start=0, step=1, limit=6
  $region2: #{srt_conv_block_forward.1} parent=0 // loop_pre_header
    _
  $region3: #{srt_conv_block_forward.1} parent=0 // loop_header
    %s10 = sphi 0, %s14
    %p11 = scmp.ge.s32.totalorder %s10, 6
    %s17 = sphi 0, %s29
    %s18 = sphi 0, %s25
    %s19 = sphi 0, %s17
    %s20 = sphi 0, %s18
    %s21 = sphi 0, %s19
    %s22 = sphi 0, %s20
    %s34 = sphi 0, %s36
    %s37 = sphi 0, %s34
    %s38 = sphi 0, %s37
    %s54 = sphi 0, %s38
    %s70 = sphi 0, %s72
    %s73 = sphi 0, %s70
    %s74 = sphi 0, %s73
    %s90 = sphi 0, %s74
    %s94 = sphi 0, %s94
    %s96 = sphi 0, %s94
    %s97 = sphi 0, %s96
    %s111 = sphi 0, %s97
    %s115 = sphi 0, %s115
    %s117 = sphi 0, %s115
    %s118 = sphi 0, %s117
    %s132 = sphi 0, %s118
    %s140 = sphi 0, %s142
    %s143 = sphi 0, %s140
    %s144 = sphi 0, %s143
    %s160 = sphi 0, %s144
  $region4: #{srt_conv_block_forward.1} parent=0 // loop_header_branch
    %13 = sbr.rel (%p11) target = $region8
  $region5: #{srt_conv_block_forward.1} parent=0 // loop_body
    %s15 = ssub.s32 %s10, 1
    %s16 = ssub.s32 %s10, 2
    %s23 = sadd.s32 1, %s18
    %p24 = scmp.ge.s32.totalorder %s23, 2
    %s25 = scalar_select %p24, 0, %s23
    %s26 = sadd.s32 1, %s17
    %s27 = scalar_select %p24, %s26, %s17
    %p28 = scmp.ge.s32.totalorder %s27, 2
    %s29 = scalar_select %p28, 0, %s27
    %s30 = ssub.s32 %s17, %s29
    %s31 = ssub.s32 %s18, %s25
    %s32 = sor.u32 %s30, %s31
    %p33 = scmp.eq.s32.totalorder %s32, 0
    %s35 = sadd.s32 %s34, 1
    %s36 = scalar_select %p33, %s34, %s35
    %p39 = pneg %p33
    %p40 = scmp.eq.s32.totalorder %s10, 3
    %p41 = por %p39, %p40
    %p42 = scmp.ne.s32.totalorder %s34, %s37
    %p43 = scmp.eq.s32.totalorder %s10, 0
    %p44 = por %p42, %p43
    %p45 = scmp.ne.s32.totalorder %s34, %s37
    %p46 = scmp.eq.s32.totalorder %s15, 3
    %p47 = por %p45, %p46
    %p48 = scmp.ne.s32.totalorder %s37, %s38
    %p49 = scmp.eq.s32.totalorder %s15, 0
    %p50 = por %p48, %p49
    %p51 = scmp.ne.s32.totalorder %s37, %s38
    %p52 = scmp.eq.s32.totalorder %s16, 3
    %p53 = por %p51, %p52
    %p55 = scmp.ne.s32.totalorder %s38, %s54
    %p56 = scmp.eq.s32.totalorder %s16, 0
    %p57 = por %p55, %p56
    %s58 = smul.u32 %s18, 4
    %s59 = ssub.s32 %s58, 1
    %p60 = scmp.gt.s32.totalorder %s59, 0
    %s61 = scalar_select %p60, %s59, 0
    %s62 = smul.u32 %s25, 4
    %s63 = ssub.s32 %s62, 1
    %p64 = scmp.gt.s32.totalorder %s63, 0
    %s65 = scalar_select %p64, %s63, 0
    %s66 = ssub.s32 %s17, %s29
    %s67 = ssub.s32 %s61, %s65
    %s68 = sor.u32 %s66, %s67
    %p69 = scmp.eq.s32.totalorder %s68, 0
    %s71 = sadd.s32 %s70, 1
    %s72 = scalar_select %p69, %s70, %s71
    %p75 = pneg %p69
    %p76 = scmp.eq.s32.totalorder %s10, 3
    %p77 = por %p75, %p76
    %p78 = scmp.ne.s32.totalorder %s70, %s73
    %p79 = scmp.eq.s32.totalorder %s10, 0
    %p80 = por %p78, %p79
    %p81 = scmp.ne.s32.totalorder %s70, %s73
    %p82 = scmp.eq.s32.totalorder %s15, 3
    %p83 = por %p81, %p82
    %p84 = scmp.ne.s32.totalorder %s73, %s74
    %p85 = scmp.eq.s32.totalorder %s15, 0
    %p86 = por %p84, %p85
    %p87 = scmp.ne.s32.totalorder %s73, %s74
    %p88 = scmp.eq.s32.totalorder %s16, 3
    %p89 = por %p87, %p88
    %p91 = scmp.ne.s32.totalorder %s74, %s90
    %p92 = scmp.eq.s32.totalorder %s16, 0
    %p93 = por %p91, %p92
    %s95 = sadd.s32 %s94, 1
    %p98 = scmp.eq.s32.totalorder %s10, 3
    %p99 = scmp.ne.s32.totalorder %s94, %s96
    %p100 = scmp.eq.s32.totalorder %s10, 0
    %p101 = por %p99, %p100
    %p102 = scmp.ne.s32.totalorder %s94, %s96
    %p103 = scmp.eq.s32.totalorder %s15, 3
    %p104 = por %p102, %p103
    %p105 = scmp.ne.s32.totalorder %s96, %s97
    %p106 = scmp.eq.s32.totalorder %s15, 0
    %p107 = por %p105, %p106
    %p108 = scmp.ne.s32.totalorder %s96, %s97
    %p109 = scmp.eq.s32.totalorder %s16, 3
    %p110 = por %p108, %p109
    %p112 = scmp.ne.s32.totalorder %s97, %s111
    %p113 = scmp.eq.s32.totalorder %s16, 0
    %p114 = por %p112, %p113
    %s116 = sadd.s32 %s115, 1
    %p119 = scmp.eq.s32.totalorder %s10, 3
    %p120 = scmp.ne.s32.totalorder %s115, %s117
    %p121 = scmp.eq.s32.totalorder %s10, 0
    %p122 = por %p120, %p121
    %p123 = scmp.ne.s32.totalorder %s115, %s117
    %p124 = scmp.eq.s32.totalorder %s15, 3
    %p125 = por %p123, %p124
    %p126 = scmp.ne.s32.totalorder %s117, %s118
    %p127 = scmp.eq.s32.totalorder %s15, 0
    %p128 = por %p126, %p127
    %p129 = scmp.ne.s32.totalorder %s117, %s118
    %p130 = scmp.eq.s32.totalorder %s16, 3
    %p131 = por %p129, %p130
    %p133 = scmp.ne.s32.totalorder %s118, %s132
    %p134 = scmp.eq.s32.totalorder %s16, 0
    %p135 = por %p133, %p134
    %s136 = ssub.s32 %s17, %s29
    %s137 = ssub.s32 %s18, %s25
    %s138 = sor.u32 %s136, %s137
    %p139 = scmp.eq.s32.totalorder %s138, 0
    %s141 = sadd.s32 %s140, 1
    %s142 = scalar_select %p139, %s140, %s141
    %p145 = pneg %p139
    %p146 = scmp.eq.s32.totalorder %s10, 3
    %p147 = por %p145, %p146
    %p148 = scmp.ne.s32.totalorder %s140, %s143
    %p149 = scmp.eq.s32.totalorder %s10, 0
    %p150 = por %p148, %p149
    %p151 = scmp.ne.s32.totalorder %s140, %s143
    %p152 = scmp.eq.s32.totalorder %s15, 3
    %p153 = por %p151, %p152
    %p154 = scmp.ne.s32.totalorder %s143, %s144
    %p155 = scmp.eq.s32.totalorder %s15, 0
    %p156 = por %p154, %p155
    %p157 = scmp.ne.s32.totalorder %s143, %s144
    %p158 = scmp.eq.s32.totalorder %s16, 3
    %p159 = por %p157, %p158
    %p161 = scmp.ne.s32.totalorder %s144, %s160
    %p162 = scmp.eq.s32.totalorder %s16, 0
    %p163 = por %p161, %p162
    %p164 = scmp.le.s32.totalorder 1, %s10
    %p165 = scmp.lt.s32.totalorder %s10, 5
    %p166 = pnand %p164, %p165
    %p167 = pneg %p166
    // Predicated region
    $region9: #{srt_conv_block_forward.1} parent=5 // pred_check
      _
    $region10: #{srt_conv_block_forward.1} parent=5 // pred_check_branch
      %169 = sbr.rel (%p166) target = $region12
    $region11: #{srt_conv_block_forward.1} parent=5 // pred_region
      %s170 = ssub.s32 %s10, 1
      // Predicated region
      $region13: #{srt_conv_block_forward.1} parent=11 // pred_check
        %p171 = pneg %p107
      $region14: #{srt_conv_block_forward.1} parent=11 // pred_check_branch
        %173 = sbr.rel (%p171) target = $region16
      $region15: #{srt_conv_block_forward.1} parent=11 // pred_region
        _
      $region16: #{srt_conv_block_forward.1} parent=11 // pred_fallthru
        _
      // Predicated region
      $region17: #{srt_conv_block_forward.1} parent=11 // pred_check
        %p174 = pneg %p128
      $region18: #{srt_conv_block_forward.1} parent=11 // pred_check_branch
        %176 = sbr.rel (%p174) target = $region20
      $region19: #{srt_conv_block_forward.1} parent=11 // pred_region
        _
      $region20: #{srt_conv_block_forward.1} parent=11 // pred_fallthru
        _
    $region12: #{srt_conv_block_forward.1} parent=5 // pred_fallthru
      _
    %p177 = scmp.lt.s32.totalorder %s10, 4
    // Predicated region
    $region21: #{srt_conv_block_forward.1} parent=5 // pred_check
      %p178 = pneg %p177
    $region22: #{srt_conv_block_forward.1} parent=5 // pred_check_branch
      %180 = sbr.rel (%p178) target = $region24
    $region23: #{srt_conv_block_forward.1} parent=5 // pred_region
      // Predicated region
      $region25: #{srt_conv_block_forward.1} parent=23 // pred_check
        %p181 = pneg %p44
      $region26: #{srt_conv_block_forward.1} parent=23 // pred_check_branch
        %183 = sbr.rel (%p181) target = $region28
      $region27: #{srt_conv_block_forward.1} parent=23 // pred_region
        %s184 = smul.u32 4, %s18
        %p185 = scmp.lt.s32.totalorder %s17, 1
        %s186 = scalar_select %p185, %s17, 1
        %p187 = scmp.lt.s32.totalorder %s184, 7
        %s188 = scalar_select %p187, %s184, 7
        %s189 = smul.addr %s188, 2
        %s190 = smul.addr %s186, 16
        %s191 = sadd.s32 %s189, %s190
        %s192 = smul.addr %s191, 4
        %s193 = scalar_lea.vmem %s0, %s192
        %s194 = smul.u32 4, %s18
      $region28: #{srt_conv_block_forward.1} parent=23 // pred_fallthru
        _
      // Predicated region
      $region29: #{srt_conv_block_forward.1} parent=23 // pred_check
        %p195 = pneg %p80
      $region30: #{srt_conv_block_forward.1} parent=23 // pred_check_branch
        %197 = sbr.rel (%p195) target = $region32
      $region31: #{srt_conv_block_forward.1} parent=23 // pred_region
        %s198 = smul.u32 %s18, 4
        %s199 = ssub.s32 %s198, 1
        %p200 = scmp.gt.s32.totalorder %s199, 0
        %s201 = scalar_select %p200, %s199, 0
        %p202 = scmp.lt.s32.totalorder %s17, 1
        %s203 = scalar_select %p202, %s17, 1
        %p204 = scmp.lt.s32.totalorder %s201, 7
        %s205 = scalar_select %p204, %s201, 7
        %s206 = smul.addr %s205, 2
        %s207 = smul.addr %s203, 16
        %s208 = sadd.s32 %s206, %s207
        %s209 = smul.addr %s208, 4
        %s210 = scalar_lea.vmem %s1, %s209
        %s211 = smul.u32 %s18, 4
        %s212 = ssub.s32 %s211, 1
        %p213 = scmp.gt.s32.totalorder %s212, 0
        %s214 = scalar_select %p213, %s212, 0
      $region32: #{srt_conv_block_forward.1} parent=23 // pred_fallthru
        _
    $region24: #{srt_conv_block_forward.1} parent=5 // pred_fallthru
      _
    %p215 = scmp.le.s32.totalorder 1, %s10
    %p216 = scmp.lt.s32.totalorder %s10, 5
    %p217 = pnand %p215, %p216
    %p218 = pneg %p217
    // Predicated region
    $region33: #{srt_conv_block_forward.1} parent=5 // pred_check
      _
    $region34: #{srt_conv_block_forward.1} parent=5 // pred_check_branch
      %220 = sbr.rel (%p217) target = $region36
    $region35: #{srt_conv_block_forward.1} parent=5 // pred_region
      %s221 = ssub.s32 %s10, 1
      %s222 = smul.u32 4, %s20
      %p223 = scmp.lt.s32.totalorder %s19, 1
      %s224 = scalar_select %p223, %s19, 1
      %p225 = scmp.lt.s32.totalorder %s222, 7
      %s226 = scalar_select %p225, %s222, 7
      %s227 = smul.addr %s226, 2
      %s228 = smul.addr %s224, 16
      %s229 = sadd.s32 %s227, %s228
      %s230 = smul.addr %s229, 4
      %s231 = scalar_lea.vmem %s0, %s230
      %p232 = pneg %p50
      %p233 = pneg %p47
      %s234 = smul.u32 %s20, 4
      %s235 = ssub.s32 %s234, 1
      %p236 = scmp.gt.s32.totalorder %s235, 0
      %s237 = scalar_select %p236, %s235, 0
      %p238 = scmp.lt.s32.totalorder %s19, 1
      %s239 = scalar_select %p238, %s19, 1
      %p240 = scmp.lt.s32.totalorder %s237, 7
      %s241 = scalar_select %p240, %s237, 7
      %s242 = smul.addr %s241, 2
      %s243 = smul.addr %s239, 16
      %s244 = sadd.s32 %s242, %s243
      %s245 = smul.addr %s244, 4
      %s246 = scalar_lea.vmem %s1, %s245
      %p247 = pneg %p86
      %p248 = pneg %p83
      %p249 = pneg %p107
      %p250 = pneg %p104
      %p251 = pneg %p128
      %p252 = pneg %p125
      %p253 = pneg %p156
      %p254 = pneg %p153
      %s255 = smul.u32 4, %s20
      %p256 = scmp.lt.s32.totalorder %s19, 1
      %s257 = scalar_select %p256, %s19, 1
      %p258 = scmp.lt.s32.totalorder %s255, 7
      %s259 = scalar_select %p258, %s255, 7
      %s260 = smul.addr %s257, 8
      %s261 = sadd.s32 %s259, %s260
      %s262 = smul.addr %s261, 8
      %s263 = scalar_lea.vmem %s4, %s262
      %s264 = smul.u32 4, %s20
      %p265 = scmp.lt.s32.totalorder %s19, 1
      %s266 = scalar_select %p265, %s19, 1
      %p267 = scmp.lt.s32.totalorder %s264, 7
      %s268 = scalar_select %p267, %s264, 7
      %s269 = smul.addr %s268, 2
      %s270 = smul.addr %s266, 16
      %s271 = sadd.s32 %s269, %s270
      %s272 = smul.addr %s271, 4
      %s273 = scalar_lea.vmem %s0, %s272
      %s274 = smul.u32 4, %s20
      %s275 = smul.u32 %s20, 4
      %s276 = ssub.s32 %s275, 1
      %p277 = scmp.gt.s32.totalorder %s276, 0
      %s278 = scalar_select %p277, %s276, 0
      %p279 = scmp.lt.s32.totalorder %s19, 1
      %s280 = scalar_select %p279, %s19, 1
      %p281 = scmp.lt.s32.totalorder %s278, 7
      %s282 = scalar_select %p281, %s278, 7
      %s283 = smul.addr %s282, 2
      %s284 = smul.addr %s280, 16
      %s285 = sadd.s32 %s283, %s284
      %s286 = smul.addr %s285, 4
      %s287 = scalar_lea.vmem %s1, %s286
      %s288 = smul.u32 %s20, 4
      %s289 = ssub.s32 %s288, 1
      %p290 = scmp.gt.s32.totalorder %s289, 0
      %s291 = scalar_select %p290, %s289, 0
      %s292 = smul.u32 4, %s20
      %p293 = scmp.lt.s32.totalorder %s19, 1
      %s294 = scalar_select %p293, %s19, 1
      %p295 = scmp.lt.s32.totalorder %s292, 7
      %s296 = scalar_select %p295, %s292, 7
      %s297 = smul.addr %s294, 8
      %s298 = sadd.s32 %s296, %s297
      %s299 = smul.addr %s298, 8
      %s300 = scalar_lea.vmem %s4, %s299
      %s301 = smul.u32 4, %s20
      %v303 = vld [vmem:[%s2] sm:$0xf]
      %v304 = vld [vmem:[%s2 + $0x4] sm:$0xf]
      %v305 = vld [vmem:[%s2 + $0x8] sm:$0xf]
      %v306 = vld [vmem:[%s2 + $0xc] sm:$0xf]
      %v307 = vld [vmem:[%s2 + $0x10] sm:$0xf]
      %v308 = vld [vmem:[%s2 + $0x14] sm:$0xf]
      %v309 = vld [vmem:[%s2 + $0x18] sm:$0xf]
      %v310 = vld [vmem:[%s2 + $0x1c] sm:$0xf]
      %v311 = vld [vmem:[%s2 + $0x20] sm:$0xf]
      %v312 = vld [vmem:[%s2 + $0x24] sm:$0xf]
      %v313 = vld [vmem:[%s2 + $0x28] sm:$0xf]
      %v314 = vld [vmem:[%s2 + $0x2c] sm:$0xf]
      %v315 = vld [vmem:[%s2 + $0x30] sm:$0xf]
      %v316 = vld [vmem:[%s2 + $0x34] sm:$0xf]
      %v317 = vld [vmem:[%s2 + $0x38] sm:$0xf]
      %v318 = vld [vmem:[%s2 + $0x3c] sm:$0xf]
      %v319 = vld [vmem:[%s2 + $0x40] sm:$0xf]
      %v320 = vld [vmem:[%s2 + $0x44] sm:$0xf]
      %v321 = vld [vmem:[%s3] sm:$0xf]
      %v322 = vld [vmem:[%s3 + $0x4] sm:$0xf]
      %v323 = vld [vmem:[%s3 + $0x8] sm:$0xf]
      %v324 = vld [vmem:[%s3 + $0xc] sm:$0xf]
      %v325 = vld [vmem:[%s3 + $0x10] sm:$0xf]
      %v326 = vld [vmem:[%s3 + $0x14] sm:$0xf]
      %v327 = vld [vmem:[%s3 + $0x18] sm:$0xf]
      %v328 = vld [vmem:[%s3 + $0x1c] sm:$0xf]
      %p329 = scmp.eq.s32.totalorder %s20, 0
      // Predicated region
      $region37: #{srt_conv_block_forward.1} parent=35 // pred_check
        %p330 = pneg %p329
      $region38: #{srt_conv_block_forward.1} parent=35 // pred_check_branch
        %332 = sbr.rel (%p330) target = $region40
      $region39: #{srt_conv_block_forward.1} parent=35 // pred_region
        %vm333 = vcmask 125952
        %334 = vst.msk [vmem:[#allocation2] sm:$0xf] %vm333, 0
      $region40: #{srt_conv_block_forward.1} parent=35 // pred_fallthru
        _
      %p335 = scmp.gt.s32.totalorder %s20, 0
      // Predicated region
      $region41: #{srt_conv_block_forward.1} parent=35 // pred_check
        %p336 = pneg %p335
      $region42: #{srt_conv_block_forward.1} parent=35 // pred_check_branch
        %338 = sbr.rel (%p336) target = $region44
      $region43: #{srt_conv_block_forward.1} parent=35 // pred_region
        %v339 = vld [vmem:[%s287] sm:$0xff]
        %v341 = vunpack.c.l.b16 %v339
        %v342 = vunpack.c.h.b16 %v339
        %v343 = vpack.c.b16 %v341, %v341
        %v344 = vpack.c.b16 %v342, %v342
        %v364 = vunpack.c.l.b16 %v303
        %v365 = vunpack.c.l.b16 %v304
        %v366 = vunpack.c.l.b16 %v305
        %v367 = vunpack.c.l.b16 %v306
        %v368 = vunpack.c.l.b16 %v307
        %v369 = vunpack.c.l.b16 %v308
        %v370 = vunpack.c.l.b16 %v309
        %v371 = vunpack.c.l.b16 %v310
        %v372 = vunpack.c.l.b16 %v311
        %v373 = vunpack.c.l.b16 %v312
        %v374 = vunpack.c.l.b16 %v313
        %v375 = vunpack.c.l.b16 %v314
        %v376 = vunpack.c.l.b16 %v315
        %v377 = vunpack.c.l.b16 %v316
        %v378 = vunpack.c.l.b16 %v317
        %v379 = vunpack.c.l.b16 %v318
        %v380 = vunpack.c.l.b16 %v319
        %v381 = vunpack.c.l.b16 %v320
        %v382 = vpack.c.b16 %v365, %v364
        %v383 = vpack.c.b16 %v367, %v366
        %v384 = vpack.c.b16 %v369, %v368
        %v385 = vpack.c.b16 %v371, %v370
        %v386 = vpack.c.b16 %v373, %v372
        %v387 = vpack.c.b16 %v375, %v374
        %v388 = vpack.c.b16 %v377, %v376
        %v389 = vpack.c.b16 %v379, %v378
        %v390 = vpack.c.b16 %v381, %v380
        %vm400 = vcmask 130048
        %v402 = vsel %vm400, %v344, 0
        %404 = vmatpush.bf16.msra.mxu0 %v389
        %405 = vmatpush.bf16.msra.mxu0 %v388
        %406 = vmatpush.bf16.msra.mxu0 %v387
        %407 = vmatpush.bf16.msra.mxu0 %v386
        %408 = vmatpush.bf16.msra.mxu0 %v385
        %409 = vmatpush.bf16.msra.mxu0 %v384
        %410 = vmatpush.bf16.msra.mxu0 %v383
        %411 = vmatpush.bf16.msra.mxu0 %v382
        %412 = vmatmul.bf16.gmra.mxu0 %v343
        %v413 = vpop.f32.mrf.mxu0
        %v414 = vadd.f32 0.0, %v413
        %v415 = vpop.f32.mrf.mxu0
        %416 = vdwg.mxu0
        %417 = vmatpush.bf16.msra.mxu0 0
        %418 = vmatpush.bf16.msra.mxu0 0
        %419 = vmatpush.bf16.msra.mxu0 0
        %420 = vmatpush.bf16.msra.mxu0 0
        %421 = vmatpush.bf16.msra.mxu0 0
        %422 = vmatpush.bf16.msra.mxu0 0
        %423 = vmatpush.bf16.msra.mxu0 0
        %424 = vmatpush.bf16.msra.mxu0 %v390
        %425 = vmatmul.bf16.gmra.mxu0 %v402
        %v426 = vpop.f32.mrf.mxu0
        %v427 = vadd.f32 %v414, %v426
        %v428 = vpop.f32.mrf.mxu0
        %429 = vdwg.mxu0
        %v430 = vmax.f32 %v427, 0.0
        %v431 = vpack.c.bf16 %v430, %v430
        %vm432 = vcmask 125952
        %433 = vst.msk [vmem:[#allocation2] sm:$0xf] %vm432, %v431
      $region44: #{srt_conv_block_forward.1} parent=35 // pred_fallthru
        _
      %v434 = vld [vmem:[%s273] sm:$0xff]
      %v436 = vunpack.c.l.b16 %v434
      %v437 = vunpack.c.h.b16 %v434
      %v438 = vpack.c.b16 %v436, %v436
      %v439 = vpack.c.b16 %v437, %v437
      %v459 = vunpack.c.l.b16 %v303
      %v460 = vunpack.c.l.b16 %v304
      %v461 = vunpack.c.l.b16 %v305
      %v462 = vunpack.c.l.b16 %v306
      %v463 = vunpack.c.l.b16 %v307
      %v464 = vunpack.c.l.b16 %v308
      %v465 = vunpack.c.l.b16 %v309
      %v466 = vunpack.c.l.b16 %v310
      %v467 = vunpack.c.l.b16 %v311
      %v468 = vunpack.c.l.b16 %v312
      %v469 = vunpack.c.l.b16 %v313
      %v470 = vunpack.c.l.b16 %v314
      %v471 = vunpack.c.l.b16 %v315
      %v472 = vunpack.c.l.b16 %v316
      %v473 = vunpack.c.l.b16 %v317
      %v474 = vunpack.c.l.b16 %v318
      %v475 = vunpack.c.l.b16 %v319
      %v476 = vunpack.c.l.b16 %v320
      %v477 = vpack.c.b16 %v460, %v459
      %v478 = vpack.c.b16 %v462, %v461
      %v479 = vpack.c.b16 %v464, %v463
      %v480 = vpack.c.b16 %v466, %v465
      %v481 = vpack.c.b16 %v468, %v467
      %v482 = vpack.c.b16 %v470, %v469
      %v483 = vpack.c.b16 %v472, %v471
      %v484 = vpack.c.b16 %v474, %v473
      %v485 = vpack.c.b16 %v476, %v475
      %vm495 = vcmask 130048
      %v497 = vsel %vm495, %v439, 0
      %499 = vmatpush.bf16.msra.mxu0 %v484
      %500 = vmatpush.bf16.msra.mxu0 %v483
      %501 = vmatpush.bf16.msra.mxu0 %v482
      %502 = vmatpush.bf16.msra.mxu0 %v481
      %503 = vmatpush.bf16.msra.mxu0 %v480
      %504 = vmatpush.bf16.msra.mxu0 %v479
      %505 = vmatpush.bf16.msra.mxu0 %v478
      %506 = vmatpush.bf16.msra.mxu0 %v477
      %507 = vmatmul.bf16.gmra.mxu0 %v438
      %v508 = vpop.f32.mrf.mxu0
      %v509 = vadd.f32 0.0, %v508
      %v510 = vpop.f32.mrf.mxu0
      %511 = vdwg.mxu0
      %512 = vmatpush.bf16.msra.mxu0 0
      %513 = vmatpush.bf16.msra.mxu0 0
      %514 = vmatpush.bf16.msra.mxu0 0
      %515 = vmatpush.bf16.msra.mxu0 0
      %516 = vmatpush.bf16.msra.mxu0 0
      %517 = vmatpush.bf16.msra.mxu0 0
      %518 = vmatpush.bf16.msra.mxu0 0
      %519 = vmatpush.bf16.msra.mxu0 %v485
      %520 = vmatmul.bf16.gmra.mxu0 %v497
      %v521 = vpop.f32.mrf.mxu0
      %v522 = vadd.f32 %v509, %v521
      %v523 = vpop.f32.mrf.mxu0
      %524 = vdwg.mxu0
      %v525 = vmax.f32 %v522, 0.0
      %v526 = vpack.c.bf16 %v525, %v525
      %s527 = scalar_lea.vmem [#allocation2], 4
      %vm528 = vcmask 125952
      %529 = vst.msk [vmem:[%s527] sm:$0xf] %vm528, %v526
      %s530 = scalar_lea.vmem %s273, 8
      %v531 = vld [vmem:[%s530] sm:$0xff]
      %v533 = vunpack.c.l.b16 %v531
      %v534 = vunpack.c.h.b16 %v531
      %v535 = vpack.c.b16 %v533, %v533
      %v536 = vpack.c.b16 %v534, %v534
      %v539 = vsel %vm495, %v536, 0
      %541 = vmatpush.bf16.msra.mxu0 %v484
      %542 = vmatpush.bf16.msra.mxu0 %v483
      %543 = vmatpush.bf16.msra.mxu0 %v482
      %544 = vmatpush.bf16.msra.mxu0 %v481
      %545 = vmatpush.bf16.msra.mxu0 %v480
      %546 = vmatpush.bf16.msra.mxu0 %v479
      %547 = vmatpush.bf16.msra.mxu0 %v478
      %548 = vmatpush.bf16.msra.mxu0 %v477
      %549 = vmatmul.bf16.gmra.mxu0 %v535
      %v550 = vpop.f32.mrf.mxu0
      %v551 = vadd.f32 0.0, %v550
      %v552 = vpop.f32.mrf.mxu0
      %553 = vdwg.mxu0
      %554 = vmatpush.bf16.msra.mxu0 0
      %555 = vmatpush.bf16.msra.mxu0 0
      %556 = vmatpush.bf16.msra.mxu0 0
      %557 = vmatpush.bf16.msra.mxu0 0
      %558 = vmatpush.bf16.msra.mxu0 0
      %559 = vmatpush.bf16.msra.mxu0 0
      %560 = vmatpush.bf16.msra.mxu0 0
      %561 = vmatpush.bf16.msra.mxu0 %v485
      %562 = vmatmul.bf16.gmra.mxu0 %v539
      %v563 = vpop.f32.mrf.mxu0
      %v564 = vadd.f32 %v551, %v563
      %v565 = vpop.f32.mrf.mxu0
      %566 = vdwg.mxu0
      %v567 = vmax.f32 %v564, 0.0
      %v568 = vpack.c.bf16 %v567, %v567
      %s569 = scalar_lea.vmem [#allocation2], 8
      %570 = vst.msk [vmem:[%s569] sm:$0xf] %vm528, %v568
      %s571 = scalar_lea.vmem %s273, 16
      %v572 = vld [vmem:[%s571] sm:$0xff]
      %v574 = vunpack.c.l.b16 %v572
      %v575 = vunpack.c.h.b16 %v572
      %v576 = vpack.c.b16 %v574, %v574
      %v577 = vpack.c.b16 %v575, %v575
      %v580 = vsel %vm495, %v577, 0
      %582 = vmatpush.bf16.msra.mxu0 %v484
      %583 = vmatpush.bf16.msra.mxu0 %v483
      %584 = vmatpush.bf16.msra.mxu0 %v482
      %585 = vmatpush.bf16.msra.mxu0 %v481
      %586 = vmatpush.bf16.msra.mxu0 %v480
      %587 = vmatpush.bf16.msra.mxu0 %v479
      %588 = vmatpush.bf16.msra.mxu0 %v478
      %589 = vmatpush.bf16.msra.mxu0 %v477
      %590 = vmatmul.bf16.gmra.mxu0 %v576
      %v591 = vpop.f32.mrf.mxu0
      %v592 = vadd.f32 0.0, %v591
      %v593 = vpop.f32.mrf.mxu0
      %594 = vdwg.mxu0
      %595 = vmatpush.bf16.msra.mxu0 0
      %596 = vmatpush.bf16.msra.mxu0 0
      %597 = vmatpush.bf16.msra.mxu0 0
      %598 = vmatpush.bf16.msra.mxu0 0
      %599 = vmatpush.bf16.msra.mxu0 0
      %600 = vmatpush.bf16.msra.mxu0 0
      %601 = vmatpush.bf16.msra.mxu0 0
      %602 = vmatpush.bf16.msra.mxu0 %v485
      %603 = vmatmul.bf16.gmra.mxu0 %v580
      %v604 = vpop.f32.mrf.mxu0
      %v605 = vadd.f32 %v592, %v604
      %v606 = vpop.f32.mrf.mxu0
      %607 = vdwg.mxu0
      %v608 = vmax.f32 %v605, 0.0
      %v609 = vpack.c.bf16 %v608, %v608
      %s610 = scalar_lea.vmem [#allocation2], 12
      %611 = vst.msk [vmem:[%s610] sm:$0xf] %vm528, %v609
      %s612 = scalar_lea.vmem %s273, 24
      %v613 = vld [vmem:[%s612] sm:$0xff]
      %v615 = vunpack.c.l.b16 %v613
      %v616 = vunpack.c.h.b16 %v613
      %v617 = vpack.c.b16 %v615, %v615
      %v618 = vpack.c.b16 %v616, %v616
      %v621 = vsel %vm495, %v618, 0
      %623 = vmatpush.bf16.msra.mxu0 %v484
      %624 = vmatpush.bf16.msra.mxu0 %v483
      %625 = vmatpush.bf16.msra.mxu0 %v482
      %626 = vmatpush.bf16.msra.mxu0 %v481
      %627 = vmatpush.bf16.msra.mxu0 %v480
      %628 = vmatpush.bf16.msra.mxu0 %v479
      %629 = vmatpush.bf16.msra.mxu0 %v478
      %630 = vmatpush.bf16.msra.mxu0 %v477
      %631 = vmatmul.bf16.gmra.mxu0 %v617
      %v632 = vpop.f32.mrf.mxu0
      %v633 = vadd.f32 0.0, %v632
      %v634 = vpop.f32.mrf.mxu0
      %635 = vdwg.mxu0
      %636 = vmatpush.bf16.msra.mxu0 0
      %637 = vmatpush.bf16.msra.mxu0 0
      %638 = vmatpush.bf16.msra.mxu0 0
      %639 = vmatpush.bf16.msra.mxu0 0
      %640 = vmatpush.bf16.msra.mxu0 0
      %641 = vmatpush.bf16.msra.mxu0 0
      %642 = vmatpush.bf16.msra.mxu0 0
      %643 = vmatpush.bf16.msra.mxu0 %v485
      %644 = vmatmul.bf16.gmra.mxu0 %v621
      %v645 = vpop.f32.mrf.mxu0
      %v646 = vadd.f32 %v633, %v645
      %v647 = vpop.f32.mrf.mxu0
      %648 = vdwg.mxu0
      %v649 = vmax.f32 %v646, 0.0
      %v650 = vpack.c.bf16 %v649, %v649
      %s651 = scalar_lea.vmem [#allocation2], 16
      %652 = vst.msk [vmem:[%s651] sm:$0xf] %vm528, %v650
      %v653 = vld [vmem:[#allocation2] sm:$0xf]
      %v654 = vld [vmem:[%s527] sm:$0xf]
      %v656 = vunpack.c.l.b16 %v653
      %v657 = vpack.c.b16 %v656, %v656
      %v659 = vshrl.u32 %v657, 16
      %v661 = vrot.slane %v659, 7
      %v662 = vshll.u32 %v657, 16
      %v664 = vor.u32 %v661, %v662
      %vm666 = vcmask 1040384
      %vm667 = vsmask.f32 256
      %vm668 = vmand %vm666, %vm667
      %v669 = vsel %vm668, 0, %v664
      %v671 = vunpack.c.l.b16 %v654
      %v672 = vpack.c.b16 %v671, %v671
      %v674 = vshrl.u32 %v672, 16
      %v676 = vrot.slane %v674, 7
      %v677 = vshll.u32 %v672, 16
      %v679 = vor.u32 %v676, %v677
      %v681 = vsel %vm668, 0, %v679
      %682 = vrot.lane.b32.xlu0 %v657, 16
      %v683 = vpop.permute.xlu0 %682
      %685 = vrot.lane.b32.xlu0 %v681, 32
      %v686 = vpop.permute.xlu0 %685
      %687 = vrot.lane.b32.xlu0 %v672, 48
      %v688 = vpop.permute.xlu0 %687
      %v691 = vsel %vm495, %v669, %v683
      %vm692 = vcmask 261120
      %v694 = vsel %vm692, %v691, %v686
      %vm695 = vcmask 392192
      %v697 = vsel %vm695, %v694, %v688
      %v706 = vunpack.c.l.b16 %v321
      %v707 = vunpack.c.l.b16 %v322
      %v708 = vunpack.c.l.b16 %v323
      %v709 = vunpack.c.l.b16 %v324
      %v710 = vunpack.c.l.b16 %v325
      %v711 = vunpack.c.l.b16 %v326
      %v712 = vunpack.c.l.b16 %v327
      %v713 = vunpack.c.l.b16 %v328
      %v714 = vpack.c.b16 %v707, %v706
      %v715 = vpack.c.b16 %v709, %v708
      %v716 = vpack.c.b16 %v711, %v710
      %v717 = vpack.c.b16 %v713, %v712
      %vm722 = vcmask 523264
      %v723 = vsel %vm722, %v697, 0
      %725 = vmatpush.bf16.msra.mxu0 0
      %726 = vmatpush.bf16.msra.mxu0 0
      %727 = vmatpush.bf16.msra.mxu0 0
      %728 = vmatpush.bf16.msra.mxu0 0
      %729 = vmatpush.bf16.msra.mxu0 %v717
      %730 = vmatpush.bf16.msra.mxu0 %v716
      %731 = vmatpush.bf16.msra.mxu0 %v715
      %732 = vmatpush.bf16.msra.mxu0 %v714
      %733 = vmatmul.bf16.gmra.mxu0 %v723
      %v734 = vpop.f32.mrf.mxu0
      %v735 = vadd.f32 0.0, %v734
      %v736 = vpop.f32.mrf.mxu0
      %737 = vdwg.mxu0
      %v738 = vmax.f32 %v735, 0.0
      %vm739 = vcmask 64512
      %740 = vst.msk [vmem:[%s300] sm:$0xff] %vm739, %v738
      %v741 = vld [vmem:[%s527] sm:$0xf]
      %v742 = vld [vmem:[%s569] sm:$0xf]
      %v744 = vunpack.c.l.b16 %v741
      %v745 = vpack.c.b16 %v744, %v744
      %v747 = vshrl.u32 %v745, 16
      %v749 = vrot.slane %v747, 7
      %v750 = vshll.u32 %v745, 16
      %v752 = vor.u32 %v749, %v750
      %v754 = vsel %vm668, 0, %v752
      %v756 = vunpack.c.l.b16 %v742
      %v757 = vpack.c.b16 %v756, %v756
      %v759 = vshrl.u32 %v757, 16
      %v761 = vrot.slane %v759, 7
      %v762 = vshll.u32 %v757, 16
      %v764 = vor.u32 %v761, %v762
      %v766 = vsel %vm668, 0, %v764
      %767 = vrot.lane.b32.xlu0 %v745, 16
      %v768 = vpop.permute.xlu0 %767
      %770 = vrot.lane.b32.xlu0 %v766, 32
      %v771 = vpop.permute.xlu0 %770
      %772 = vrot.lane.b32.xlu0 %v757, 48
      %v773 = vpop.permute.xlu0 %772
      %v776 = vsel %vm495, %v754, %v768
      %v778 = vsel %vm692, %v776, %v771
      %v780 = vsel %vm695, %v778, %v773
      %v781 = vsel %vm722, %v780, 0
      %783 = vmatpush.bf16.msra.mxu0 0
      %784 = vmatpush.bf16.msra.mxu0 0
      %785 = vmatpush.bf16.msra.mxu0 0
      %786 = vmatpush.bf16.msra.mxu0 0
      %787 = vmatpush.bf16.msra.mxu0 %v717
      %788 = vmatpush.bf16.msra.mxu0 %v716
      %789 = vmatpush.bf16.msra.mxu0 %v715
      %790 = vmatpush.bf16.msra.mxu0 %v714
      %791 = vmatmul.bf16.gmra.mxu0 %v781
      %v792 = vpop.f32.mrf.mxu0
      %v793 = vadd.f32 0.0, %v792
      %v794 = vpop.f32.mrf.mxu0
      %795 = vdwg.mxu0
      %v796 = vmax.f32 %v793, 0.0
      %s797 = scalar_lea.vmem %s300, 8
      %798 = vst.msk [vmem:[%s797] sm:$0xff] %vm739, %v796
      %v799 = vld [vmem:[%s569] sm:$0xf]
      %v800 = vld [vmem:[%s610] sm:$0xf]
      %v802 = vunpack.c.l.b16 %v799
      %v803 = vpack.c.b16 %v802, %v802
      %v805 = vshrl.u32 %v803, 16
      %v807 = vrot.slane %v805, 7
      %v808 = vshll.u32 %v803, 16
      %v810 = vor.u32 %v807, %v808
      %v812 = vsel %vm668, 0, %v810
      %v814 = vunpack.c.l.b16 %v800
      %v815 = vpack.c.b16 %v814, %v814
      %v817 = vshrl.u32 %v815, 16
      %v819 = vrot.slane %v817, 7
      %v820 = vshll.u32 %v815, 16
      %v822 = vor.u32 %v819, %v820
      %v824 = vsel %vm668, 0, %v822
      %825 = vrot.lane.b32.xlu0 %v803, 16
      %v826 = vpop.permute.xlu0 %825
      %828 = vrot.lane.b32.xlu0 %v824, 32
      %v829 = vpop.permute.xlu0 %828
      %830 = vrot.lane.b32.xlu0 %v815, 48
      %v831 = vpop.permute.xlu0 %830
      %v834 = vsel %vm495, %v812, %v826
      %v836 = vsel %vm692, %v834, %v829
      %v838 = vsel %vm695, %v836, %v831
      %v839 = vsel %vm722, %v838, 0
      %841 = vmatpush.bf16.msra.mxu0 0
      %842 = vmatpush.bf16.msra.mxu0 0
      %843 = vmatpush.bf16.msra.mxu0 0
      %844 = vmatpush.bf16.msra.mxu0 0
      %845 = vmatpush.bf16.msra.mxu0 %v717
      %846 = vmatpush.bf16.msra.mxu0 %v716
      %847 = vmatpush.bf16.msra.mxu0 %v715
      %848 = vmatpush.bf16.msra.mxu0 %v714
      %849 = vmatmul.bf16.gmra.mxu0 %v839
      %v850 = vpop.f32.mrf.mxu0
      %v851 = vadd.f32 0.0, %v850
      %v852 = vpop.f32.mrf.mxu0
      %853 = vdwg.mxu0
      %v854 = vmax.f32 %v851, 0.0
      %s855 = scalar_lea.vmem %s300, 16
      %856 = vst.msk [vmem:[%s855] sm:$0xff] %vm739, %v854
      %v857 = vld [vmem:[%s610] sm:$0xf]
      %v858 = vld [vmem:[%s651] sm:$0xf]
      %v860 = vunpack.c.l.b16 %v857
      %v861 = vpack.c.b16 %v860, %v860
      %v863 = vshrl.u32 %v861, 16
      %v865 = vrot.slane %v863, 7
      %v866 = vshll.u32 %v861, 16
      %v868 = vor.u32 %v865, %v866
      %v870 = vsel %vm668, 0, %v868
      %v872 = vunpack.c.l.b16 %v858
      %v873 = vpack.c.b16 %v872, %v872
      %v875 = vshrl.u32 %v873, 16
      %v877 = vrot.slane %v875, 7
      %v878 = vshll.u32 %v873, 16
      %v880 = vor.u32 %v877, %v878
      %v882 = vsel %vm668, 0, %v880
      %883 = vrot.lane.b32.xlu0 %v861, 16
      %v884 = vpop.permute.xlu0 %883
      %886 = vrot.lane.b32.xlu0 %v882, 32
      %v887 = vpop.permute.xlu0 %886
      %888 = vrot.lane.b32.xlu0 %v873, 48
      %v889 = vpop.permute.xlu0 %888
      %v892 = vsel %vm495, %v870, %v884
      %v894 = vsel %vm692, %v892, %v887
      %v896 = vsel %vm695, %v894, %v889
      %v897 = vsel %vm722, %v896, 0
      %899 = vmatpush.bf16.msra.mxu0 0
      %900 = vmatpush.bf16.msra.mxu0 0
      %901 = vmatpush.bf16.msra.mxu0 0
      %902 = vmatpush.bf16.msra.mxu0 0
      %903 = vmatpush.bf16.msra.mxu0 %v717
      %904 = vmatpush.bf16.msra.mxu0 %v716
      %905 = vmatpush.bf16.msra.mxu0 %v715
      %906 = vmatpush.bf16.msra.mxu0 %v714
      %907 = vmatmul.bf16.gmra.mxu0 %v897
      %v908 = vpop.f32.mrf.mxu0
      %v909 = vadd.f32 0.0, %v908
      %v910 = vpop.f32.mrf.mxu0
      %911 = vdwg.mxu0
      %v912 = vmax.f32 %v909, 0.0
      %s913 = scalar_lea.vmem %s300, 24
      %914 = vst.msk [vmem:[%s913] sm:$0xff] %vm739, %v912
      %s915 = smul.u32 4, %s20
      %p916 = scmp.lt.s32.totalorder %s19, 1
      %s917 = scalar_select %p916, %s19, 1
      %p918 = scmp.lt.s32.totalorder %s915, 7
      %s919 = scalar_select %p918, %s915, 7
      %s920 = smul.addr %s917, 8
      %s921 = sadd.s32 %s919, %s920
      %s922 = smul.addr %s921, 8
      %s923 = scalar_lea.vmem %s4, %s922
      // Predicated region
      $region45: #{srt_conv_block_forward.1} parent=35 // pred_check
        %p924 = pneg %p153
      $region46: #{srt_conv_block_forward.1} parent=35 // pred_check_branch
        %926 = sbr.rel (%p924) target = $region48
      $region47: #{srt_conv_block_forward.1} parent=35 // pred_region
        %s927 = smul.u32 4, %s20
      $region48: #{srt_conv_block_forward.1} parent=35 // pred_fallthru
        _
    $region36: #{srt_conv_block_forward.1} parent=5 // pred_fallthru
      _
    %p928 = scmp.le.s32.totalorder 2, %s10
    // Predicated region
    $region49: #{srt_conv_block_forward.1} parent=5 // pred_check
      %p929 = pneg %p928
    $region50: #{srt_conv_block_forward.1} parent=5 // pred_check_branch
      %931 = sbr.rel (%p929) target = $region52
    $region51: #{srt_conv_block_forward.1} parent=5 // pred_region
      %s932 = ssub.s32 %s10, 2
      // Predicated region
      $region53: #{srt_conv_block_forward.1} parent=51 // pred_check
        %p933 = pneg %p159
      $region54: #{srt_conv_block_forward.1} parent=51 // pred_check_branch
        %935 = sbr.rel (%p933) target = $region56
      $region55: #{srt_conv_block_forward.1} parent=51 // pred_region
        %s936 = smul.u32 4, %s22
        %p937 = scmp.lt.s32.totalorder %s21, 1
        %s938 = scalar_select %p937, %s21, 1
        %p939 = scmp.lt.s32.totalorder %s936, 7
        %s940 = scalar_select %p939, %s936, 7
        %s941 = smul.addr %s938, 8
        %s942 = sadd.s32 %s940, %s941
        %s943 = smul.addr %s942, 8
        %s944 = scalar_lea.vmem %s4, %s943
      $region56: #{srt_conv_block_forward.1} parent=51 // pred_fallthru
        _
    $region52: #{srt_conv_block_forward.1} parent=5 // pred_fallthru
      _
  $region6: #{srt_conv_block_forward.1} parent=0 // loop_footer
    %s14 = sadd.s32 1, %s10
  $region7: #{srt_conv_block_forward.1} parent=0 // loop_footer_branch
    %9 = sbr.rel target = $region3
  $region8: #{srt_conv_block_forward.1} parent=0 // loop_exit
    _

</llo_original>
